<compile_context>
chip_gen: v6e
topology: v6e:2x2x1
jax: 0.10.0
libtpu: 0.0.40
codegen_flags: <defaults>
</compile_context>

<pallas_src>
import functools
from typing import NamedTuple

import jax
import jax.numpy as jnp
from jax.experimental import pallas as pl
from jax.experimental.pallas import tpu as pltpu


def _round_up(x, m):
    return ((x + m - 1) // m) * m


def _vmem_capacity_bytes():
    try:
        return int(pltpu.get_tpu_info().vmem_capacity_bytes)
    except Exception:
        return 64 * 1024 * 1024  # conservative default (v7x per-TensorCore)


# ------------------------------ kernels -------------------------------------

def _swiglu_partial(x_ref, w13_ref, w2_ref, tn):
    """Contribution of one hidden chunk: (silu(x@w1) * (x@w3)) @ w2, in f32."""
    # Fused first stage: one MXU pass yields both projections for this chunk.
    h13 = jnp.dot(x_ref[...], w13_ref[...], preferred_element_type=jnp.float32)
    h1 = h13[:, :tn]
    h3 = h13[:, tn:]
    g = (h1 * jax.nn.sigmoid(h1)) * h3          # SiLU gate in f32 (VPU + EUP)
    return jnp.dot(g.astype(w2_ref.dtype), w2_ref[...],
                   preferred_element_type=jnp.float32)


def _ffn_kernel_single(x_ref, w13_ref, w2_ref, o_ref, *, tn):
    """K == 1: no hidden reduction, write the output tile directly."""
    o_ref[...] = _swiglu_partial(x_ref, w13_ref, w2_ref, tn).astype(o_ref.dtype)


def _ffn_kernel_f32out(x_ref, w13_ref, w2_ref, o_ref, *, tn):
    """f32 output: accumulate directly into the VMEM-resident output block."""
    k = pl.program_id(1)

    @pl.when(k == 0)
    def _():
        o_ref[...] = jnp.zeros_like(o_ref)

    o_ref[...] += _swiglu_partial(x_ref, w13_ref, w2_ref, tn)


def _ffn_kernel_acc(x_ref, w13_ref, w2_ref, o_ref, acc_ref, *, tn):
    """Narrow output dtype: f32 scratch accumulator, cast on the last k step."""
    k = pl.program_id(1)

    @pl.when(k == 0)
    def _():
        acc_ref[...] = jnp.zeros_like(acc_ref)

    acc_ref[...] += _swiglu_partial(x_ref, w13_ref, w2_ref, tn)

    @pl.when(k == pl.num_programs(1) - 1)
    def _():
        o_ref[...] = acc_ref[...].astype(o_ref.dtype)


# --------------------------- weight packing ---------------------------------

class PackedFFN(NamedTuple):
    w13t: jax.Array     # (dim, K*2*tn): per hidden chunk layout [w1 chunk | w3 chunk]
    w2t: jax.Array      # (K*tn, dim)
    dim: int
    hidden: int
    tn: int
    num_k: int


def pack_ffn_weights(w1, w2, w3, *, tn=None, compute_dtype=jnp.bfloat16):
    """One-time weight layout prep. Call once; reuse for every forward call.

    w1, w3 : (hidden, dim)  -- PyTorch nn.Linear convention (out, in)
    w2     : (dim, hidden)
    """
    hidden, dim = w1.shape
    assert w3.shape == (hidden, dim) and w2.shape == (dim, hidden)

    vmem_cap = _vmem_capacity_bytes()
    budget = max(vmem_cap - 24 * 1024 * 1024, 32 * 1024 * 1024)
    if tn is None:
        tn_max = 512 if vmem_cap >= 96 * 1024 * 1024 else 256
        tn = min(tn_max, _round_up(hidden, 128))
        # Keep the double-buffered weight chunks (~12*dim*tn bytes in bf16)
        # well under budget so the token tile (tm) never has to shrink.
        while tn > 128 and 12 * dim * tn > budget // 2:
            tn = max(128, _round_up(tn // 2, 128))
    tn = _round_up(tn, 128)                      # lane-aligned h1/h3 split
    num_k = pl.cdiv(hidden, tn)
    hidden_pad = num_k * tn

    w1t = w1.T.astype(compute_dtype)             # (dim, hidden)
    w3t = w3.T.astype(compute_dtype)             # (dim, hidden)
    w2t = w2.T.astype(compute_dtype)             # (hidden, dim)
    if hidden_pad != hidden:
        pad_h = hidden_pad - hidden              # zero-padded hidden contributes 0
        w1t = jnp.pad(w1t, ((0, 0), (0, pad_h)))
        w3t = jnp.pad(w3t, ((0, 0), (0, pad_h)))
        w2t = jnp.pad(w2t, ((0, pad_h), (0, 0)))

    w13t = jnp.concatenate(
        [w1t.reshape(dim, num_k, tn), w3t.reshape(dim, num_k, tn)], axis=2
    ).reshape(dim, num_k * 2 * tn)
    return PackedFFN(w13t=w13t, w2t=w2t, dim=dim, hidden=hidden, tn=tn, num_k=num_k)


# ------------------------------ forward -------------------------------------

def feed_forward(x, packed: PackedFFN):
    """LLaMA SwiGLU FFN with pre-packed weights:  w2( silu(w1 x) * (w3 x) )."""
    orig_shape = x.shape
    out_dtype = x.dtype
    dim, tn, num_k = packed.dim, packed.tn, packed.num_k
    assert orig_shape[-1] == dim, (orig_shape, dim)
    compute_dtype = packed.w13t.dtype
    out_itemsize = jnp.dtype(out_dtype).itemsize
    use_acc = out_itemsize < 4                   # f32 output accumulates in-place

    xm = x.reshape(-1, dim)
    M = xm.shape[0]

    # ---- token-tile selection -----------------------------------------------
    vmem_cap = _vmem_capacity_bytes()
    budget = max(vmem_cap - 24 * 1024 * 1024, 32 * 1024 * 1024)
    tm_max = 512 if vmem_cap >= 96 * 1024 * 1024 else 256
    num_m = pl.cdiv(M, tm_max)
    if num_m == 1 and M >= 32:
        num_m = 2                                # keep both v7x TensorCores busy
    tm = _round_up(pl.cdiv(M, num_m), 16)        # bf16 min tile is (16, 128)

    def footprint(tm_):
        f = 2 * 2 * tm_ * dim                    # x block, bf16, double-buffered
        f += 12 * dim * tn                       # [w1|w3] + w2 chunks, bf16, 2-deep
        f += 2 * tm_ * dim * out_itemsize        # out block, double-buffered
        f += 12 * tm_ * tn                       # f32 intermediates (h13 + gate)
        if use_acc:
            f += 4 * tm_ * dim                   # f32 scratch accumulator
        return f

    # tn is fixed by the packed layout (already chip-sized); only shrink tm as
    # a last resort.
    while footprint(tm) > budget and tm > 16:
        tm = max(16, _round_up(tm // 2, 16))

    M_pad = _round_up(M, tm)
    vmem_limit = int(min(vmem_cap - 8 * 1024 * 1024,
                         max(32 * 1024 * 1024,
                             footprint(tm) + 24 * 1024 * 1024)))

    # ---- per-call activation prep --------------------------------------------
    xm_c = xm.astype(compute_dtype)
    if M_pad != M:
        xm_c = jnp.pad(xm_c, ((0, M_pad - M), (0, 0)))   # zero rows -> zero outputs

    if num_k == 1:
        kernel = functools.partial(_ffn_kernel_single, tn=tn)
        scratch = []
    elif use_acc:
        kernel = functools.partial(_ffn_kernel_acc, tn=tn)
        scratch = [pltpu.VMEM((tm, dim), jnp.float32)]
    else:
        kernel = functools.partial(_ffn_kernel_f32out, tn=tn)
        scratch = []

    out = pl.pallas_call(
        kernel,
        out_shape=jax.ShapeDtypeStruct((M_pad, dim), out_dtype),
        grid_spec=pltpu.PrefetchScalarGridSpec(
            num_scalar_prefetch=0,
            grid=(M_pad // tm, num_k),
            in_specs=[
                pl.BlockSpec((tm, dim), lambda i, k: (i, 0)),       # x tile (reused over k)
                pl.BlockSpec((dim, 2 * tn), lambda i, k: (0, k)),   # [w1|w3] hidden chunk k
                pl.BlockSpec((tn, dim), lambda i, k: (k, 0)),       # w2 hidden chunk k
            ],
            out_specs=pl.BlockSpec((tm, dim), lambda i, k: (i, 0)),
            scratch_shapes=scratch,
        ),
        compiler_params=pltpu.CompilerParams(
            dimension_semantics=("parallel", "arbitrary"),
            vmem_limit_bytes=vmem_limit,
        ),
    )(xm_c, packed.w13t, packed.w2t)

    return out[:M].reshape(orig_shape)


def feed_forward_ref(x, w1, w2, w3):
    """Pure-JAX f32 reference matching the PyTorch module semantics."""
    h1 = x @ w1.T
    h3 = x @ w3.T
    return (h1 * jax.nn.sigmoid(h1) * h3) @ w2.T


if __name__ == "__main__":
    # Module config: FeedForward(dim=128, hidden_dim=96)
    #   -> internal hidden_dim = int(4 * 96 / 3) = 128
    dim = 128
    hidden = int(4 * 96 / 3)                     # 128

    key = jax.random.PRNGKey(0)
    kx, k1, k2, k3, kx2, k4, k5, k6, kx3 = jax.random.split(key, 9)

    # Deterministic nn.Linear-style init: U(-1/sqrt(fan_in), 1/sqrt(fan_in)).
    b1 = 1.0 / (dim ** 0.5)
    b2 = 1.0 / (hidden ** 0.5)
    w1 = jax.random.uniform(k1, (hidden, dim), jnp.float32, -b1, b1)   # (hidden, dim)
    w2 = jax.random.uniform(k2, (dim, hidden), jnp.float32, -b2, b2)   # (dim, hidden)
    w3 = jax.random.uniform(k3, (hidden, dim), jnp.float32, -b1, b1)   # (hidden, dim)

    # One-time weight repack, hoisted out of the per-call path.
    packed = pack_ffn_weights(w1, w2, w3)

    # Case 1: small (batch=2, seq=8) -> single tile, single hidden chunk.
    x = jax.random.normal(kx, (2, 8, dim), dtype=jnp.float32)
    out = jax.block_until_ready(feed_forward(x, packed))
    ref = feed_forward_ref(x, w1, w2, w3)
    assert out.shape == x.shape, (out.shape, x.shape)
    # bf16 matmul inputs with f32 accumulation -> loosened tolerance vs f32 ref.
    assert jnp.allclose(out, ref, atol=2e-2, rtol=2e-2), float(
        jnp.max(jnp.abs(out - ref)))

    # Case 2: M=320 -> two 160-row tiles (padding-free, 2-way parallel M axis).
    x2 = jax.random.normal(kx2, (4, 80, dim), dtype=jnp.float32)
    out2 = jax.block_until_ready(feed_forward(x2, packed))
    ref2 = feed_forward_ref(x2, w1, w2, w3)
    assert out2.shape == x2.shape, (out2.shape, x2.shape)
    assert jnp.allclose(out2, ref2, atol=2e-2, rtol=2e-2), float(
        jnp.max(jnp.abs(out2 - ref2)))

    # Case 3: larger hidden split into K=3 chunks -> exercises the hidden
    # reduction with in-place f32 accumulation into the output block.
    hidden_b = 384
    b1b = 1.0 / (dim ** 0.5)
    b2b = 1.0 / (hidden_b ** 0.5)
    w1b = jax.random.uniform(k4, (hidden_b, dim), jnp.float32, -b1b, b1b)
    w2b = jax.random.uniform(k5, (dim, hidden_b), jnp.float32, -b2b, b2b)
    w3b = jax.random.uniform(k6, (hidden_b, dim), jnp.float32, -b1b, b1b)
    packed_b = pack_ffn_weights(w1b, w2b, w3b, tn=128)
    x3 = jax.random.normal(kx3, (2, 8, dim), dtype=jnp.float32)
    out3 = jax.block_until_ready(feed_forward(x3, packed_b))
    ref3 = feed_forward_ref(x3, w1b, w2b, w3b)
    assert jnp.allclose(out3, ref3, atol=3e-2, rtol=3e-2), float(
        jnp.max(jnp.abs(out3 - ref3)))

    # Case 4: bf16 activations/output -> f32 scratch-accumulator path.
    x4 = x3.astype(jnp.bfloat16)
    out4 = jax.block_until_ready(feed_forward(x4, packed_b))
    ref4 = feed_forward_ref(x4.astype(jnp.float32), w1b, w2b, w3b)
    assert out4.dtype == jnp.bfloat16
    assert jnp.allclose(out4.astype(jnp.float32), ref4, atol=8e-2, rtol=8e-2), float(
        jnp.max(jnp.abs(out4.astype(jnp.float32) - ref4)))

    print("KERNEL_OK")
</pallas_src>

<mosaic_0001>
module attributes {stable_mosaic.version = 11 : i64} {
  func.func @_ffn_kernel_single(%arg0: i32, %arg1: i32, %arg2: memref<16x128xbf16, #tpu.memory_space<vmem>>, %arg3: memref<128x256xbf16, #tpu.memory_space<vmem>>, %arg4: memref<128x128xbf16, #tpu.memory_space<vmem>>, %arg5: memref<16x128xf32, #tpu.memory_space<vmem>>) attributes {dimension_semantics = [#tpu.dimension_semantics<parallel>, #tpu.dimension_semantics<arbitrary>], iteration_bounds = array<i64: 1, 1>, scalar_prefetch = 0 : i64, scratch_operands = 0 : i64, tpu.core_type = #tpu.core_type<tc>, window_params = [{transform_indices = @transform_0, window_bounds = array<i64: 16, 128>}, {transform_indices = @transform_1, window_bounds = array<i64: 128, 256>}, {transform_indices = @transform_2, window_bounds = array<i64: 128, 128>}, {transform_indices = @transform_3, window_bounds = array<i64: 16, 128>}]} {
    %c0 = arith.constant 0 : index
    %c0_0 = arith.constant 0 : index
    %0 = vector.load %arg2[%c0, %c0_0] : memref<16x128xbf16, #tpu.memory_space<vmem>>, vector<16x128xbf16>
    %c0_1 = arith.constant 0 : index
    %c0_2 = arith.constant 0 : index
    %1 = vector.load %arg3[%c0_1, %c0_2] : memref<128x256xbf16, #tpu.memory_space<vmem>>, vector<128x256xbf16>
    %cst = arith.constant dense<0.000000e+00> : vector<16x256xf32>
    %2 = tpu.matmul %0, %1, %cst {dimension_numbers = #tpu.dot_dimension_numbers<[1], [0], [0], [1], [0, 0, 1, 1], [], []>} : vector<16x128xbf16>, vector<128x256xbf16>, vector<16x256xf32> -> vector<16x256xf32>
    %3 = vector.extract_strided_slice %2 {offsets = [0, 0], sizes = [16, 128], strides = [1, 1]} : vector<16x256xf32> to vector<16x128xf32>
    %4 = vector.extract_strided_slice %2 {offsets = [0, 128], sizes = [16, 128], strides = [1, 1]} : vector<16x256xf32> to vector<16x128xf32>
    %5 = arith.negf %3 : vector<16x128xf32>
    %6 = math.exp %5 : vector<16x128xf32>
    %cst_3 = arith.constant 1.000000e+00 : f32
    %7 = vector.broadcast %cst_3 : f32 to vector<16x128xf32>
    %8 = arith.addf %7, %6 : vector<16x128xf32>
    %9 = arith.divf %7, %8 : vector<16x128xf32>
    %10 = arith.mulf %3, %9 : vector<16x128xf32>
    %11 = arith.mulf %10, %4 : vector<16x128xf32>
    %12 = arith.truncf %11 : vector<16x128xf32> to vector<16x128xbf16>
    %c0_4 = arith.constant 0 : index
    %c0_5 = arith.constant 0 : index
    %13 = vector.load %arg4[%c0_4, %c0_5] : memref<128x128xbf16, #tpu.memory_space<vmem>>, vector<128x128xbf16>
    %cst_6 = arith.constant dense<0.000000e+00> : vector<16x128xf32>
    %14 = tpu.matmul %12, %13, %cst_6 {dimension_numbers = #tpu.dot_dimension_numbers<[1], [0], [0], [1], [0, 0, 1, 1], [], []>} : vector<16x128xbf16>, vector<128x128xbf16>, vector<16x128xf32> -> vector<16x128xf32>
    %c0_7 = arith.constant 0 : index
    %c0_8 = arith.constant 0 : index
    %15 = vector.load %arg5[%c0_7, %c0_8] : memref<16x128xf32, #tpu.memory_space<vmem>>, vector<16x128xf32>
    tpu.vector_store %arg5[%c0_7, %c0_8], %14 {strides = array<i32>} : memref<16x128xf32, #tpu.memory_space<vmem>>, vector<16x128xf32>,
    return
  }
  func.func @transform_0(%arg0: i32, %arg1: i32) -> (i32, i32) {
    %c0_i32 = arith.constant 0 : i32
    %c0_i32_0 = arith.constant 0 : i32
    return %arg0, %c0_i32 : i32, i32
  }
  func.func @transform_1(%arg0: i32, %arg1: i32) -> (i32, i32) {
    %c0_i32 = arith.constant 0 : i32
    %c0_i32_0 = arith.constant 0 : i32
    return %c0_i32, %arg1 : i32, i32
  }
  func.func @transform_2(%arg0: i32, %arg1: i32) -> (i32, i32) {
    %c0_i32 = arith.constant 0 : i32
    %c0_i32_0 = arith.constant 0 : i32
    return %arg1, %c0_i32 : i32, i32
  }
  func.func @transform_3(%arg0: i32, %arg1: i32) -> (i32, i32) {
    %c0_i32 = arith.constant 0 : i32
    %c0_i32_0 = arith.constant 0 : i32
    return %arg0, %c0_i32 : i32, i32
  }
}

</mosaic_0001>

<llo_original>
// kernel: tpu_custom_call.1
$region0: #{tpu_custom_call.1}
  #allocation0 [shape = 'u32[]', space=smem, size = 0x4, offset = 0x4, fixed_abs, tag = 'smem constant byte address 0x4 - core index']
  #allocation1 [shape = 'u32[144,128]{1,0:T(1,128)}', space=vmem, size = 0x12000, scoped, tag = 'internal scratch']
  %s0 = inlined_call_operand.hbm [shape: bf16[16,128], index: 0, kind: input, shape index: {}]
  %s1 = inlined_call_operand.hbm [shape: bf16[128,256], index: 1, kind: input, shape index: {}]
  %s2 = inlined_call_operand.hbm [shape: bf16[128,128], index: 2, kind: input, shape index: {}]
  %s3 = inlined_call_operand.hbm [shape: f32[16,128], index: 3, kind: output, shape index: {}]
  %s4 = sld [smem:[#allocation0]]
  $region34: #{tpu_custom_call.1} parent=0
    _
  %s6 = ssub.s32 1, %s4
  %s7 = scalar_select 0, %s6, %s4
  $region1: #{tpu_custom_call.1} parent=0
    #allocation2 [shape = 'u8[4096]{0}', space=vmem, size = 0x1000, scoped, tag = 'input window, operand 0, single buffered']
    #allocation3 [shape = 's32[1]{0}', space=sflag, size = 0x4, scoped, tag = 'scoped memory for tpu_custom_call.1']
    #allocation4 [shape = 's32[1]{0}', space=sflag, size = 0x4, scoped, tag = 'scoped memory for tpu_custom_call.1']
    #allocation5 [shape = 'u8[65536]{0}', space=vmem, size = 0x10000, scoped, tag = 'input window, operand 1, single buffered']
    #allocation6 [shape = 's32[1]{0}', space=sflag, size = 0x4, scoped, tag = 'scoped memory for tpu_custom_call.1']
    #allocation7 [shape = 'u8[32768]{0}', space=vmem, size = 0x8000, scoped, tag = 'input window, operand 2, single buffered']
    #allocation8 [shape = 'u8[8192]{0}', space=vmem, size = 0x2000, scoped, tag = 'output window, operand 0, single buffered']
    %8 = vsyncpa [#allocation3], 0
    %9 = vsyncpa [#allocation6], 0
    %10 = vsyncpa [#allocation4], 0
    // Predicated region
    $region2: #{tpu_custom_call.1} parent=1 // pred_check
      _
    $region3: #{tpu_custom_call.1} parent=1 // pred_check_branch
      %12 = sbr.rel (0) target = $region5
    $region4: #{tpu_custom_call.1} parent=1 // pred_region
      %s14 = ssub.s32 128, 128
      %15 = vsyncadd [#allocation3], %s14
      %s16 = sshll.u32 [#allocation2], 4
      %s17 = int_to_ptr.vmem [resolvable:$true] %s16
      %22 = dma.hbm_to_vmem [thread:$0]  %s0, 128, %s17, [#allocation3], 64, 64, 4
    $region5: #{tpu_custom_call.1} parent=1 // pred_fallthru
      _
    // Predicated region
    $region6: #{tpu_custom_call.1} parent=1 // pred_check
      _
    $region7: #{tpu_custom_call.1} parent=1 // pred_check_branch
      %24 = sbr.rel (0) target = $region9
    $region8: #{tpu_custom_call.1} parent=1 // pred_region
      %s26 = ssub.s32 2048, 2048
      %27 = vsyncadd [#allocation6], %s26
      %s28 = sshll.u32 [#allocation5], 4
      %s29 = int_to_ptr.vmem [resolvable:$true] %s28
      %34 = dma.hbm_to_vmem [thread:$0]  %s1, 2048, %s29, [#allocation6], 128, 128, 8
    $region9: #{tpu_custom_call.1} parent=1 // pred_fallthru
      _
    // Predicated region
    $region10: #{tpu_custom_call.1} parent=1 // pred_check
      _
    $region11: #{tpu_custom_call.1} parent=1 // pred_check_branch
      %36 = sbr.rel (0) target = $region13
    $region12: #{tpu_custom_call.1} parent=1 // pred_region
      %s38 = ssub.s32 1024, 1024
      %39 = vsyncadd [#allocation6], %s38
      %s40 = sshll.u32 [#allocation7], 4
      %s41 = int_to_ptr.vmem [resolvable:$true] %s40
      %46 = dma.hbm_to_vmem [thread:$0]  %s2, 1024, %s41, [#allocation6], 64, 64, 4
    $region13: #{tpu_custom_call.1} parent=1 // pred_fallthru
      _
    // Predicated region
    $region14: #{tpu_custom_call.1} parent=1 // pred_check
      _
    $region15: #{tpu_custom_call.1} parent=1 // pred_check_branch
      %48 = sbr.rel (0) target = $region17
    $region16: #{tpu_custom_call.1} parent=1 // pred_region
      %49 = dma.done [#allocation3], 128
    $region17: #{tpu_custom_call.1} parent=1 // pred_fallthru
      _
    // Predicated region
    $region18: #{tpu_custom_call.1} parent=1 // pred_check
      _
    $region19: #{tpu_custom_call.1} parent=1 // pred_check_branch
      %51 = sbr.rel (0) target = $region21
    $region20: #{tpu_custom_call.1} parent=1 // pred_region
      %52 = dma.done [#allocation6], 2048
    $region21: #{tpu_custom_call.1} parent=1 // pred_fallthru
      _
    // Predicated region
    $region22: #{tpu_custom_call.1} parent=1 // pred_check
      _
    $region23: #{tpu_custom_call.1} parent=1 // pred_check_branch
      %54 = sbr.rel (0) target = $region25
    $region24: #{tpu_custom_call.1} parent=1 // pred_region
      %55 = dma.done [#allocation6], 1024
    $region25: #{tpu_custom_call.1} parent=1 // pred_fallthru
      _
    %v57 = vld [vmem:[#allocation2] sm:$0xf]
    %v58 = vld [vmem:[#allocation2 + $0x4] sm:$0xf]
    %v59 = vld [vmem:[#allocation5] sm:$0xff]
    %v60 = vld [vmem:[#allocation5 + $0x8] sm:$0xff]
    %v61 = vld [vmem:[#allocation5 + $0x10] sm:$0xff]
    %v62 = vld [vmem:[#allocation5 + $0x18] sm:$0xff]
    %v63 = vld [vmem:[#allocation5 + $0x20] sm:$0xff]
    %v64 = vld [vmem:[#allocation5 + $0x28] sm:$0xff]
    %v65 = vld [vmem:[#allocation5 + $0x30] sm:$0xff]
    %v66 = vld [vmem:[#allocation5 + $0x38] sm:$0xff]
    %v67 = vld [vmem:[#allocation5 + $0x40] sm:$0xff]
    %v68 = vld [vmem:[#allocation5 + $0x48] sm:$0xff]
    %v69 = vld [vmem:[#allocation5 + $0x50] sm:$0xff]
    %v70 = vld [vmem:[#allocation5 + $0x58] sm:$0xff]
    %v71 = vld [vmem:[#allocation5 + $0x60] sm:$0xff]
    %v72 = vld [vmem:[#allocation5 + $0x68] sm:$0xff]
    %v73 = vld [vmem:[#allocation5 + $0x70] sm:$0xff]
    %v74 = vld [vmem:[#allocation5 + $0x78] sm:$0xff]
    %v77 = vunpack.c.l.b16 %v57
    %v78 = vunpack.c.l.b16 %v58
    %v79 = vpack.c.b16 %v78, %v77
    %v97 = vunpack.c.l.b16 %v59
    %v98 = vunpack.c.h.b16 %v59
    %v99 = vunpack.c.l.b16 %v60
    %v100 = vunpack.c.h.b16 %v60
    %v101 = vunpack.c.l.b16 %v61
    %v102 = vunpack.c.h.b16 %v61
    %v103 = vunpack.c.l.b16 %v62
    %v104 = vunpack.c.h.b16 %v62
    %v105 = vunpack.c.l.b16 %v63
    %v106 = vunpack.c.h.b16 %v63
    %v107 = vunpack.c.l.b16 %v64
    %v108 = vunpack.c.h.b16 %v64
    %v109 = vunpack.c.l.b16 %v65
    %v110 = vunpack.c.h.b16 %v65
    %v111 = vunpack.c.l.b16 %v66
    %v112 = vunpack.c.h.b16 %v66
    %v113 = vunpack.c.l.b16 %v67
    %v114 = vunpack.c.h.b16 %v67
    %v115 = vunpack.c.l.b16 %v68
    %v116 = vunpack.c.h.b16 %v68
    %v117 = vunpack.c.l.b16 %v69
    %v118 = vunpack.c.h.b16 %v69
    %v119 = vunpack.c.l.b16 %v70
    %v120 = vunpack.c.h.b16 %v70
    %v121 = vunpack.c.l.b16 %v71
    %v122 = vunpack.c.h.b16 %v71
    %v123 = vunpack.c.l.b16 %v72
    %v124 = vunpack.c.h.b16 %v72
    %v125 = vunpack.c.l.b16 %v73
    %v126 = vunpack.c.h.b16 %v73
    %v127 = vunpack.c.l.b16 %v74
    %v128 = vunpack.c.h.b16 %v74
    %v129 = vpack.c.b16 %v99, %v97
    %v130 = vpack.c.b16 %v100, %v98
    %v131 = vpack.c.b16 %v103, %v101
    %v132 = vpack.c.b16 %v104, %v102
    %v133 = vpack.c.b16 %v107, %v105
    %v134 = vpack.c.b16 %v108, %v106
    %v135 = vpack.c.b16 %v111, %v109
    %v136 = vpack.c.b16 %v112, %v110
    %v137 = vpack.c.b16 %v115, %v113
    %v138 = vpack.c.b16 %v116, %v114
    %v139 = vpack.c.b16 %v119, %v117
    %v140 = vpack.c.b16 %v120, %v118
    %v141 = vpack.c.b16 %v123, %v121
    %v142 = vpack.c.b16 %v124, %v122
    %v143 = vpack.c.b16 %v127, %v125
    %v144 = vpack.c.b16 %v128, %v126
    %161 = vmatprep.subr.bf16.mxu0 %v144
    %162 = vmatpush1.bf16.msra.mxu0 %v143
    %163 = vmatprep.subr.bf16.mxu0 %v142
    %164 = vmatpush1.bf16.msra.mxu0 %v141
    %165 = vmatprep.subr.bf16.mxu0 %v140
    %166 = vmatpush1.bf16.msra.mxu0 %v139
    %167 = vmatprep.subr.bf16.mxu0 %v138
    %168 = vmatpush1.bf16.msra.mxu0 %v137
    %169 = vmatprep.subr.bf16.mxu0 %v136
    %170 = vmatpush1.bf16.msra.mxu0 %v135
    %171 = vmatprep.subr.bf16.mxu0 %v134
    %172 = vmatpush1.bf16.msra.mxu0 %v133
    %173 = vmatprep.subr.bf16.mxu0 %v132
    %174 = vmatpush1.bf16.msra.mxu0 %v131
    %175 = vmatprep.subr.bf16.mxu0 %v130
    %176 = vmatpush1.bf16.msra.mxu0 %v129
    %177 = vmatprep.subr.bf16.mxu0 0
    %178 = vmatpush2.bf16.msra.mxu0 0
    %179 = vmatprep.subr.bf16.mxu0 0
    %180 = vmatpush2.bf16.msra.mxu0 0
    %181 = vmatprep.subr.bf16.mxu0 0
    %182 = vmatpush2.bf16.msra.mxu0 0
    %183 = vmatprep.subr.bf16.mxu0 0
    %184 = vmatpush2.bf16.msra.mxu0 0
    %185 = vmatprep.subr.bf16.mxu0 0
    %186 = vmatpush2.bf16.msra.mxu0 0
    %187 = vmatprep.subr.bf16.mxu0 0
    %188 = vmatpush2.bf16.msra.mxu0 0
    %189 = vmatprep.subr.bf16.mxu0 0
    %190 = vmatpush2.bf16.msra.mxu0 0
    %191 = vmatprep.subr.bf16.mxu0 0
    %192 = vmatpush2.bf16.msra.mxu0 0
    %193 = vmatprep.mubr.bf16.mxu0 0
    %194 = vmatmul.mubr.bf16.gmra.mxu0 %v79
    %v195 = vpop.f32.mrf.mxu0
    %v196 = vadd.f32 0.0, %v195
    %v197 = vpop.f32.mrf.mxu0
    %v198 = vadd.f32 0.0, %v197
    %v199 = vpop.f32.mrf.mxu0
    %v200 = vadd.f32 0.0, %v199
    %v201 = vpop.f32.mrf.mxu0
    %v202 = vadd.f32 0.0, %v201
    %203 = vdwg.mxu0
    %v204 = vxor.u32 %v196, 2147483648
    %v205 = vxor.u32 %v200, 2147483648
    %v206 = vmul.f32 %v204, 1.442695
    %v207 = vpow.pop %v206
    %v208 = vmul.f32 %v205, 1.442695
    %v209 = vpow.pop %v208
    %v210 = vadd.f32 %v207, 1.0
    %v211 = vadd.f32 %v209, 1.0
    %v212 = vrcp.pop %v210
    %v213 = vmul.f32 1.0, %v212
    %v214 = vrcp.pop %v211
    %v215 = vmul.f32 1.0, %v214
    %v216 = vmul.f32 %v196, %v213
    %v217 = vmul.f32 %v200, %v215
    %v218 = vmul.f32 %v216, %v198
    %v219 = vmul.f32 %v217, %v202
    %v220 = vpack.c.bf16 %v219, %v218
    %v221 = vld [vmem:[#allocation7] sm:$0xf]
    %v222 = vld [vmem:[#allocation7 + $0x4] sm:$0xf]
    %v223 = vld [vmem:[#allocation7 + $0x8] sm:$0xf]
    %v224 = vld [vmem:[#allocation7 + $0xc] sm:$0xf]
    %v225 = vld [vmem:[#allocation7 + $0x10] sm:$0xf]
    %v226 = vld [vmem:[#allocation7 + $0x14] sm:$0xf]
    %v227 = vld [vmem:[#allocation7 + $0x18] sm:$0xf]
    %v228 = vld [vmem:[#allocation7 + $0x1c] sm:$0xf]
    %v229 = vld [vmem:[#allocation7 + $0x20] sm:$0xf]
    %v230 = vld [vmem:[#allocation7 + $0x24] sm:$0xf]
    %v231 = vld [vmem:[#allocation7 + $0x28] sm:$0xf]
    %v232 = vld [vmem:[#allocation7 + $0x2c] sm:$0xf]
    %v233 = vld [vmem:[#allocation7 + $0x30] sm:$0xf]
    %v234 = vld [vmem:[#allocation7 + $0x34] sm:$0xf]
    %v235 = vld [vmem:[#allocation7 + $0x38] sm:$0xf]
    %v236 = vld [vmem:[#allocation7 + $0x3c] sm:$0xf]
    %v253 = vunpack.c.l.b16 %v221
    %v254 = vunpack.c.l.b16 %v222
    %v255 = vunpack.c.l.b16 %v223
    %v256 = vunpack.c.l.b16 %v224
    %v257 = vunpack.c.l.b16 %v225
    %v258 = vunpack.c.l.b16 %v226
    %v259 = vunpack.c.l.b16 %v227
    %v260 = vunpack.c.l.b16 %v228
    %v261 = vunpack.c.l.b16 %v229
    %v262 = vunpack.c.l.b16 %v230
    %v263 = vunpack.c.l.b16 %v231
    %v264 = vunpack.c.l.b16 %v232
    %v265 = vunpack.c.l.b16 %v233
    %v266 = vunpack.c.l.b16 %v234
    %v267 = vunpack.c.l.b16 %v235
    %v268 = vunpack.c.l.b16 %v236
    %v269 = vpack.c.b16 %v254, %v253
    %v270 = vpack.c.b16 %v256, %v255
    %v271 = vpack.c.b16 %v258, %v257
    %v272 = vpack.c.b16 %v260, %v259
    %v273 = vpack.c.b16 %v262, %v261
    %v274 = vpack.c.b16 %v264, %v263
    %v275 = vpack.c.b16 %v266, %v265
    %v276 = vpack.c.b16 %v268, %v267
    %285 = vmatprep.subr.bf16.mxu0 0
    %286 = vmatpush1.bf16.msra.mxu0 %v276
    %287 = vmatprep.subr.bf16.mxu0 0
    %288 = vmatpush1.bf16.msra.mxu0 %v275
    %289 = vmatprep.subr.bf16.mxu0 0
    %290 = vmatpush1.bf16.msra.mxu0 %v274
    %291 = vmatprep.subr.bf16.mxu0 0
    %292 = vmatpush1.bf16.msra.mxu0 %v273
    %293 = vmatprep.subr.bf16.mxu0 0
    %294 = vmatpush1.bf16.msra.mxu0 %v272
    %295 = vmatprep.subr.bf16.mxu0 0
    %296 = vmatpush1.bf16.msra.mxu0 %v271
    %297 = vmatprep.subr.bf16.mxu0 0
    %298 = vmatpush1.bf16.msra.mxu0 %v270
    %299 = vmatprep.subr.bf16.mxu0 0
    %300 = vmatpush1.bf16.msra.mxu0 %v269
    %301 = vmatprep.subr.bf16.mxu0 0
    %302 = vmatpush2.bf16.msra.mxu0 0
    %303 = vmatprep.subr.bf16.mxu0 0
    %304 = vmatpush2.bf16.msra.mxu0 0
    %305 = vmatprep.subr.bf16.mxu0 0
    %306 = vmatpush2.bf16.msra.mxu0 0
    %307 = vmatprep.subr.bf16.mxu0 0
    %308 = vmatpush2.bf16.msra.mxu0 0
    %309 = vmatprep.subr.bf16.mxu0 0
    %310 = vmatpush2.bf16.msra.mxu0 0
    %311 = vmatprep.subr.bf16.mxu0 0
    %312 = vmatpush2.bf16.msra.mxu0 0
    %313 = vmatprep.subr.bf16.mxu0 0
    %314 = vmatpush2.bf16.msra.mxu0 0
    %315 = vmatprep.subr.bf16.mxu0 0
    %316 = vmatpush2.bf16.msra.mxu0 0
    %317 = vmatprep.mubr.bf16.mxu0 0
    %318 = vmatmul.mubr.bf16.gmra.mxu0 %v220
    %v319 = vpop.f32.mrf.mxu0
    %v320 = vadd.f32 0.0, %v319
    %v321 = vpop.f32.mrf.mxu0
    %v322 = vpop.f32.mrf.mxu0
    %v323 = vadd.f32 0.0, %v322
    %v324 = vpop.f32.mrf.mxu0
    %325 = vdwg.mxu0
    %326 = vst [vmem:[#allocation8] sm:$0xff] %v320
    %327 = vst [vmem:[#allocation8 + $0x8] sm:$0xff] %v323
    // Predicated region
    $region26: #{tpu_custom_call.1} parent=1 // pred_check
      _
    $region27: #{tpu_custom_call.1} parent=1 // pred_check_branch
      %329 = sbr.rel (0) target = $region29
    $region28: #{tpu_custom_call.1} parent=1 // pred_region
      %s331 = ssub.s32 256, 256
      %332 = vsyncadd [#allocation4], %s331
      %s333 = sshll.u32 [#allocation8], 4
      %s334 = int_to_ptr.vmem [resolvable:$true] %s333
      %339 = dma.vmem_to_hbm [thread:$0]  %s334, 256, %s3, [#allocation4], 128, 128, 8
    $region29: #{tpu_custom_call.1} parent=1 // pred_fallthru
      _
    // Predicated region
    $region30: #{tpu_custom_call.1} parent=1 // pred_check
      _
    $region31: #{tpu_custom_call.1} parent=1 // pred_check_branch
      %341 = sbr.rel (0) target = $region33
    $region32: #{tpu_custom_call.1} parent=1 // pred_region
      %342 = dma.done [#allocation4], 256
    $region33: #{tpu_custom_call.1} parent=1 // pred_fallthru
      _
    %343 = vsyncpa [#allocation3], 1
    %344 = vsyncpa [#allocation6], 1
    %345 = vsyncpa [#allocation4], 1

</llo_original>
